<compile_context>
chip_gen: v7x
topology: tpu7x:2x2x1
jax: 0.10.0
libtpu: 0.0.40
codegen_flags: <defaults>
</compile_context>

<pallas_src>
import functools
import inspect
from collections import namedtuple

import jax
import jax.numpy as jnp
from jax.experimental import pallas as pl
from jax.experimental.pallas import tpu as pltpu


def _round_up(x, m):
    return ((x + m - 1) // m) * m


def _sublane(itemsize):
    # Minimum sublane multiple for a dtype: f32 -> 8, bf16 -> 16, 8-bit -> 32.
    return max(8, 32 // int(itemsize))


# ----------------------------------------------------------------------------
# One-time, cached hardware / capability queries (kept out of the hot path).
# ----------------------------------------------------------------------------
_VMEM_CAP = None
_SINGLE_BUF_OK = None


def _vmem_capacity_bytes():
    """Physical per-core VMEM, generation aware (128 MiB v5e/v6e, 64 MiB v7x)."""
    global _VMEM_CAP
    if _VMEM_CAP is None:
        try:
            _VMEM_CAP = int(pltpu.get_tpu_info().vmem_capacity_bytes)
        except Exception:
            _VMEM_CAP = 64 << 20  # conservative: assume the smallest part (v7x)
    return _VMEM_CAP


def _supports_single_buffer():
    """Cached capability check for BlockSpec(pipeline_mode=pl.Buffered(1)).

    Compiles a tiny probe kernel once per process, so the real gate kernel is
    never built twice and unrelated compile errors are never masked.
    """
    global _SINGLE_BUF_OK
    if _SINGLE_BUF_OK is not None:
        return _SINGLE_BUF_OK
    if not hasattr(pl, "Buffered"):
        _SINGLE_BUF_OK = False
        return False
    try:
        if "pipeline_mode" not in inspect.signature(pl.BlockSpec).parameters:
            _SINGLE_BUF_OK = False
            return False
    except (TypeError, ValueError):
        pass  # fall through to the functional probe
    try:
        def _probe_kernel(a_ref, o_ref):
            o_ref[...] = a_ref[...]

        probe = pl.pallas_call(
            _probe_kernel,
            out_shape=jax.ShapeDtypeStruct((8, 128), jnp.float32),
            grid=(1,),
            in_specs=[pl.BlockSpec((8, 128), lambda i: (0, 0),
                                   pipeline_mode=pl.Buffered(1))],
            out_specs=pl.BlockSpec((8, 128), lambda i: (0, 0)),
        )
        jax.jit(probe).lower(jnp.zeros((8, 128), jnp.float32)).compile()
        _SINGLE_BUF_OK = True
    except Exception:
        _SINGLE_BUF_OK = False
    return _SINGLE_BUF_OK


# ----------------------------------------------------------------------------
# Kernels
# ----------------------------------------------------------------------------
def _gate_kernel(x_ref, wt_ref, o_ref, *, e_valid, mask_pad):
    # x_ref : (tm, model_dim)   token tile, native input dtype
    # wt_ref: (model_dim, e_pad) transposed gate weight, compute dtype
    # o_ref : (tm, e_pad)        lane-dense logits tile
    x = x_ref[...].astype(wt_ref.dtype)  # in-vreg cast (budgeted in the wrapper)
    out = jnp.dot(x, wt_ref[...], preferred_element_type=jnp.float32)
    if mask_pad:  # static flag; only used for return_padded consumers
        col = jax.lax.broadcasted_iota(jnp.int32, out.shape, 1)
        out = jnp.where(col < e_valid, out, -jnp.inf)
    o_ref[...] = out.astype(o_ref.dtype)


def _gate_kernel_ktiled(x_ref, wt_ref, o_ref, acc_ref, *, e_valid, mask_pad):
    # Reduction over model_dim chunks; acc_ref: (tm, e_pad) f32 scratch.
    k = pl.program_id(1)

    @pl.when(k == 0)
    def _():
        acc_ref[...] = jnp.zeros_like(acc_ref)

    x = x_ref[...].astype(wt_ref.dtype)
    acc_ref[...] += jnp.dot(x, wt_ref[...], preferred_element_type=jnp.float32)

    @pl.when(k == pl.num_programs(1) - 1)
    def _():
        out = acc_ref[...]
        if mask_pad:
            col = jax.lax.broadcasted_iota(jnp.int32, out.shape, 1)
            out = jnp.where(col < e_valid, out, -jnp.inf)
        o_ref[...] = out.astype(o_ref.dtype)


# ----------------------------------------------------------------------------
# Hoistable weight preparation (call once at init / weight-update time).
# ----------------------------------------------------------------------------
PreparedGateWeight = namedtuple("PreparedGateWeight",
                                ["wT", "num_experts", "out_dtype"])


def prepare_gate_weight(wg_weight, *, fp32_gate=False,
                        bf16_mxu_for_fp32_gate=False):
    """dtype promotion + expert-axis pad to 128 lanes + transpose, hoisted out
    of the per-forward path (the gate runs every MoE layer)."""
    num_experts, _ = wg_weight.shape
    if fp32_gate:
        out_dtype = jnp.float32
        compute_dtype = jnp.bfloat16 if bf16_mxu_for_fp32_gate else jnp.float32
    else:
        out_dtype = wg_weight.dtype
        compute_dtype = wg_weight.dtype
    w = wg_weight.astype(compute_dtype)
    # e_pad stays at 128-multiples: lane-dense stores; no point chasing the
    # 256-wide MXU since the kernel is HBM-bound on x.
    e_pad = _round_up(num_experts, 128)
    if e_pad != num_experts:
        w = jnp.pad(w, ((0, e_pad - num_experts), (0, 0)))
    return PreparedGateWeight(wT=w.T, num_experts=num_experts,
                              out_dtype=out_dtype)


# ----------------------------------------------------------------------------
# Forward
# ----------------------------------------------------------------------------
def linear_topk_gate_forward(x, wg_weight=None, *, fp32_gate=False,
                             prepared=None, bf16_mxu_for_fp32_gate=False,
                             return_padded=False, tm=None, tk=None,
                             vmem_budget_bytes=None):
    """Pallas implementation of LinearTopKGate.forward.

    x:         (..., model_dim)                (any float dtype; NOT cast in wrapper)
    wg_weight: (num_global_experts, model_dim) (PyTorch nn.Linear layout), or pass
               `prepared=prepare_gate_weight(...)` to skip per-call weight prep.
    returns:   (..., num_global_experts) gate logits in the gate's compute dtype,
               or (..., e_pad) with -inf padded columns if return_padded=True.
    """
    if prepared is None:
        if wg_weight is None:
            raise ValueError("provide either wg_weight or prepared")
        prepared = prepare_gate_weight(
            wg_weight, fp32_gate=fp32_gate,
            bf16_mxu_for_fp32_gate=bf16_mxu_for_fp32_gate)
    wT, num_experts, out_dtype = prepared
    model_dim, e_pad = wT.shape

    lead_shape = x.shape[:-1]
    assert x.shape[-1] == model_dim
    x2 = x.reshape(-1, model_dim)  # no dtype cast, no token padding
    T = x2.shape[0]

    x_bytes = x2.dtype.itemsize
    w_bytes = wT.dtype.itemsize          # compute-dtype bytes
    o_bytes = jnp.dtype(out_dtype).itemsize
    needs_cast = x2.dtype != wT.dtype
    sub = max(_sublane(x_bytes), _sublane(o_bytes))

    single_buf_w = _supports_single_buffer()
    vmem_cap = _vmem_capacity_bytes()
    budget = int(vmem_budget_bytes) if vmem_budget_bytes else int(0.75 * vmem_cap)

    def _need(t, tk_, w_bufs, with_acc):
        n = 2 * t * tk_ * x_bytes                    # double-buffered x tile
        if needs_cast:
            n += t * tk_ * w_bytes                   # in-kernel cast temp
        n += w_bufs * tk_ * e_pad * w_bytes          # weight buffer(s)
        n += 2 * t * e_pad * o_bytes                 # double-buffered output tile
        if with_acc:
            n += t * e_pad * 4                       # f32 accumulator scratch
        return n

    # ---- tile sizing --------------------------------------------------------
    k_tiled = tk is not None and tk != model_dim
    if k_tiled:
        assert model_dim % tk == 0 and tk % 128 == 0, \
            "tk must divide model_dim and be a multiple of 128"

    w_bufs_fullk = 1 if single_buf_w else 2
    if tm is None:
        tm = 2048
        while tm > 256 and _need(tm, tk if k_tiled else model_dim,
                                 2 if k_tiled else w_bufs_fullk,
                                 k_tiled) > budget:
            tm //= 2
        if not k_tiled and _need(tm, model_dim, w_bufs_fullk, False) > budget:
            # Even a 256-token tile overruns the budget (very large model_dim):
            # fall back to K-tiling (reduction grid axis + f32 accumulator).
            if model_dim % 128 == 0:
                k_tiled = True
                for cand in (4096, 2048, 1024, 512, 256, 128):
                    if model_dim % cand == 0:
                        tk = cand
                        if _need(tm, tk, 2, True) <= budget:
                            break
            # else: model_dim not 128-aligned; keep full-K (rare) and request
            # the actual footprint below.
    tm = min(tm, _round_up(max(T, 1), sub))
    tm = _round_up(max(tm, sub), sub)

    # v7x megacore: ensure the "parallel" token axis has >= 2 steps so both
    # TensorCores get work (harmless on single-TC parts).
    while pl.cdiv(T, tm) < 2 and tm >= 2 * sub and T > sub:
        tm = _round_up(max(tm // 2, sub), sub)

    if not k_tiled:
        tk = model_dim

    need = _need(tm, tk, 2 if k_tiled else w_bufs_fullk, k_tiled)
    # Actual footprint + Mosaic internal-scratch headroom, capped below physical.
    vmem_limit = int(max(32 << 20, min(need + (6 << 20), int(0.85 * vmem_cap))))

    cost = pl.CostEstimate(
        flops=2 * T * model_dim * e_pad,
        transcendentals=0,
        bytes_accessed=(x2.size * x_bytes + wT.size * w_bytes
                        + T * e_pad * o_bytes),
    )
    mask_pad = bool(return_padded and e_pad != num_experts)

    if not k_tiled:
        kern = functools.partial(_gate_kernel, e_valid=num_experts,
                                 mask_pad=mask_pad)
        w_spec_kwargs = {"pipeline_mode": pl.Buffered(1)} if single_buf_w else {}
        out = pl.pallas_call(
            kern,
            out_shape=jax.ShapeDtypeStruct((T, e_pad), out_dtype),
            grid_spec=pltpu.PrefetchScalarGridSpec(
                num_scalar_prefetch=0,
                grid=(pl.cdiv(T, tm),),
                in_specs=[
                    pl.BlockSpec((tm, model_dim), lambda i: (i, 0)),
                    pl.BlockSpec((model_dim, e_pad), lambda i: (0, 0),
                                 **w_spec_kwargs),
                ],
                out_specs=pl.BlockSpec((tm, e_pad), lambda i: (i, 0)),
            ),
            compiler_params=pltpu.CompilerParams(
                dimension_semantics=("parallel",),
                vmem_limit_bytes=vmem_limit,
            ),
            cost_estimate=cost,
        )(x2, wT)
    else:
        kern = functools.partial(_gate_kernel_ktiled, e_valid=num_experts,
                                 mask_pad=mask_pad)
        out = pl.pallas_call(
            kern,
            out_shape=jax.ShapeDtypeStruct((T, e_pad), out_dtype),
            grid_spec=pltpu.PrefetchScalarGridSpec(
                num_scalar_prefetch=0,
                grid=(pl.cdiv(T, tm), model_dim // tk),
                in_specs=[
                    pl.BlockSpec((tm, tk), lambda i, k: (i, k)),
                    pl.BlockSpec((tk, e_pad), lambda i, k: (k, 0)),
                ],
                out_specs=pl.BlockSpec((tm, e_pad), lambda i, k: (i, 0)),
                scratch_shapes=[pltpu.VMEM((tm, e_pad), jnp.float32)],
            ),
            compiler_params=pltpu.CompilerParams(
                dimension_semantics=("parallel", "arbitrary"),
                vmem_limit_bytes=vmem_limit,
            ),
            cost_estimate=cost,
        )(x2, wT)

    if return_padded:
        # Padded expert columns hold -inf, safe for a fused top-k consumer.
        return out.reshape(lead_shape + (e_pad,))
    if e_pad != num_experts:
        out = out[:, :num_experts]
    return out.reshape(lead_shape + (num_experts,))


def init_linear_topk_gate_params(key, model_dim, num_global_experts,
                                 dtype=jnp.float32):
    """Deterministic init matching nn.Linear(model_dim, num_experts, bias=False):
    Kaiming-uniform, i.e. U(-1/sqrt(fan_in), 1/sqrt(fan_in))."""
    bound = 1.0 / (model_dim ** 0.5)
    return jax.random.uniform(
        key, (num_global_experts, model_dim), dtype=dtype,
        minval=-bound, maxval=bound,
    )


if __name__ == "__main__":
    batch, seq, model_dim, num_experts = 2, 8, 32, 8

    key = jax.random.PRNGKey(0)
    kx, kw, kx2, kw2 = jax.random.split(key, 4)

    x = jax.random.normal(kx, (batch, seq, model_dim), dtype=jnp.float32)
    wg = init_linear_topk_gate_params(kw, model_dim, num_experts)

    # 1) fp32_gate=True, f32 activations.
    y = jax.block_until_ready(linear_topk_gate_forward(x, wg, fp32_gate=True))
    ref = jnp.einsum("bsd,ed->bse", x, wg)
    assert y.shape == (batch, seq, num_experts)
    assert jnp.allclose(y, ref, atol=1e-5, rtol=1e-5)

    # 2) fp32_gate=False with a bf16 gate (in-kernel downcast of x).
    wg_bf16 = wg.astype(jnp.bfloat16)
    y_bf16 = jax.block_until_ready(
        linear_topk_gate_forward(x, wg_bf16, fp32_gate=False))
    ref_bf16 = jnp.einsum(
        "bsd,ed->bse",
        x.astype(jnp.bfloat16).astype(jnp.float32),
        wg_bf16.astype(jnp.float32)).astype(jnp.bfloat16)
    assert y_bf16.dtype == jnp.bfloat16
    assert jnp.allclose(y_bf16.astype(jnp.float32), ref_bf16.astype(jnp.float32),
                        atol=2e-2, rtol=2e-2)

    # 3) fp32_gate=True with bf16 activations (exercises the budgeted in-kernel
    #    upcast temp) + hoisted weight prep + padded (-inf) output path.
    x_bf16 = x.astype(jnp.bfloat16)
    prep = prepare_gate_weight(wg, fp32_gate=True)
    y_pad = jax.block_until_ready(
        linear_topk_gate_forward(x_bf16, prepared=prep, fp32_gate=True,
                                 return_padded=True))
    ref_up = jnp.einsum("bsd,ed->bse", x_bf16.astype(jnp.float32), wg)
    assert y_pad.shape == (batch, seq, 128)
    assert jnp.allclose(y_pad[..., :num_experts], ref_up, atol=1e-4, rtol=1e-4)
    assert bool(jnp.all(jnp.isneginf(y_pad[..., num_experts:])))

    # 4) K-tiled reduction path (forced via tk) at a slightly larger model_dim.
    model_dim2 = 256
    x2 = jax.random.normal(kx2, (batch, seq, model_dim2), dtype=jnp.float32)
    wg2 = init_linear_topk_gate_params(kw2, model_dim2, num_experts)
    y2 = jax.block_until_ready(
        linear_topk_gate_forward(x2, wg2, fp32_gate=True, tk=128))
    ref2 = jnp.einsum("bsd,ed->bse", x2, wg2)
    assert jnp.allclose(y2, ref2, atol=1e-5, rtol=1e-5)

    print("KERNEL_OK")
</pallas_src>

<mosaic_0001>
module attributes {stable_mosaic.version = 11 : i64} {
  func.func @_gate_kernel(%arg0: i32, %arg1: memref<8x32xf32, #tpu.memory_space<vmem>>, %arg2: memref<32x128xf32, #tpu.memory_space<vmem>>, %arg3: memref<8x128xf32, #tpu.memory_space<vmem>>) attributes {dimension_semantics = [#tpu.dimension_semantics<parallel>], iteration_bounds = array<i64: 2>, scalar_prefetch = 0 : i64, scratch_operands = 0 : i64, tpu.core_type = #tpu.core_type<tc>, window_params = [{transform_indices = @transform_0, window_bounds = array<i64: 8, 32>}, {pipeline_mode = #tpu.pipeline_mode<synchronous>, transform_indices = @transform_1, window_bounds = array<i64: 32, 128>}, {transform_indices = @transform_2, window_bounds = array<i64: 8, 128>}]} {
    %c0 = arith.constant 0 : index
    %c0_0 = arith.constant 0 : index
    %0 = vector.load %arg1[%c0, %c0_0] : memref<8x32xf32, #tpu.memory_space<vmem>>, vector<8x32xf32>
    %c0_1 = arith.constant 0 : index
    %c0_2 = arith.constant 0 : index
    %1 = vector.load %arg2[%c0_1, %c0_2] : memref<32x128xf32, #tpu.memory_space<vmem>>, vector<32x128xf32>
    %cst = arith.constant dense<0.000000e+00> : vector<8x128xf32>
    %2 = tpu.matmul %0, %1, %cst {dimension_numbers = #tpu.dot_dimension_numbers<[1], [0], [0], [1], [0, 0, 1, 1], [], []>} : vector<8x32xf32>, vector<32x128xf32>, vector<8x128xf32> -> vector<8x128xf32>
    %c0_3 = arith.constant 0 : index
    %c0_4 = arith.constant 0 : index
    %3 = vector.load %arg3[%c0_3, %c0_4] : memref<8x128xf32, #tpu.memory_space<vmem>>, vector<8x128xf32>
    tpu.vector_store %arg3[%c0_3, %c0_4], %2 {strides = array<i32>} : memref<8x128xf32, #tpu.memory_space<vmem>>, vector<8x128xf32>,
    return
  }
  func.func @transform_0(%arg0: i32) -> (i32, i32) {
    %c0_i32 = arith.constant 0 : i32
    %c0_i32_0 = arith.constant 0 : i32
    return %arg0, %c0_i32 : i32, i32
  }
  func.func @transform_1(%arg0: i32) -> (i32, i32) {
    %c0_i32 = arith.constant 0 : i32
    %c0_i32_0 = arith.constant 0 : i32
    %c0_i32_1 = arith.constant 0 : i32
    return %c0_i32, %c0_i32_0 : i32, i32
  }
  func.func @transform_2(%arg0: i32) -> (i32, i32) {
    %c0_i32 = arith.constant 0 : i32
    %c0_i32_0 = arith.constant 0 : i32
    return %arg0, %c0_i32 : i32, i32
  }
}

</mosaic_0001>

<llo_original>
// kernel: tpu_custom_call.1
$region0: #{tpu_custom_call.1}
  #allocation0 [shape = 'u32[]', space=smem, size = 0x4, offset = 0x4, fixed_abs, tag = 'smem constant byte address 0x4 - core index']
  #allocation1 [shape = 'u32[144,128]{1,0:T(1,128)}', space=vmem, size = 0x12000, scoped, tag = 'internal scratch']
  %s0 = inlined_call_operand.hbm [shape: f32[16,32], index: 0, kind: input, shape index: {}]
  %s1 = inlined_call_operand.hbm [shape: f32[32,128], index: 1, kind: input, shape index: {}]
  %s2 = inlined_call_operand.hbm [shape: f32[16,128], index: 2, kind: output, shape index: {}]
  %s3 = sld [smem:[#allocation0]]
  $region49: #{tpu_custom_call.1} parent=0
    _
  %s5 = ssub.s32 1, %s3
  %s6 = scalar_select 0, %s5, %s3
  $region1: #{tpu_custom_call.1} parent=0
    #allocation2 [shape = 'u8[8192]{0}', space=vmem, size = 0x2000, scoped, tag = 'input window, operand 0']
    #allocation3 [shape = 's32[2]{0}', space=sflag, size = 0x8, scoped, tag = 'scoped memory for tpu_custom_call.1']
    #allocation4 [shape = 's32[2]{0}', space=sflag, size = 0x8, scoped, tag = 'scoped memory for tpu_custom_call.1']
    #allocation5 [shape = 'u8[16384]{0}', space=vmem, size = 0x4000, scoped, tag = 'input window, operand 1, single buffered']
    #allocation6 [shape = 's32[1]{0}', space=sflag, size = 0x4, scoped, tag = 'scoped memory for tpu_custom_call.1']
    #allocation7 [shape = 'u8[8192]{0}', space=vmem, size = 0x2000, scoped, tag = 'output window, operand 0']
    %7 = vsyncpa [#allocation3], 0
    %s8 = scalar_lea.sflag [#allocation3], 1
    %9 = vsyncpa %s8, 0
    %10 = vsyncpa [#allocation6], 0
    %11 = vsyncpa [#allocation4], 0
    %s12 = scalar_lea.sflag [#allocation4], 1
    %13 = vsyncpa %s12, 0
    loop: start=0, step=1, limit=4
    $region2: #{tpu_custom_call.1} parent=1 // loop_pre_header
      _
    $region3: #{tpu_custom_call.1} parent=1 // loop_header
      %s15 = sphi 0, %s19
      %p16 = scmp.ge.s32.totalorder %s15, 4
      %s25 = sphi 0, %s27
      %s28 = sphi 0, %s25
      %s29 = sphi 0, %s28
      %s45 = sphi 0, %s29
      %s49 = sphi 0, %s49
      %s51 = sphi 0, %s49
      %s52 = sphi 0, %s51
      %s66 = sphi 0, %s52
      %s72 = sphi 0, %s74
      %s75 = sphi 0, %s72
      %s76 = sphi 0, %s75
      %s92 = sphi 0, %s76
    $region4: #{tpu_custom_call.1} parent=1 // loop_header_branch
      %18 = sbr.rel (%p16) target = $region8
    $region5: #{tpu_custom_call.1} parent=1 // loop_body
      %s20 = ssub.s32 %s15, 1
      %s21 = ssub.s32 %s15, 2
      %s22 = sadd.s32 %s15, 1
      %s23 = ssub.s32 %s15, %s22
      %p24 = scmp.eq.s32.totalorder %s23, 0
      %s26 = sadd.s32 %s25, 1
      %s27 = scalar_select %p24, %s25, %s26
      %p30 = pneg %p24
      %p31 = scmp.eq.s32.totalorder %s15, 1
      %p32 = por %p30, %p31
      %p33 = scmp.ne.s32.totalorder %s25, %s28
      %p34 = scmp.eq.s32.totalorder %s15, 0
      %p35 = por %p33, %p34
      %p36 = scmp.ne.s32.totalorder %s25, %s28
      %p37 = scmp.eq.s32.totalorder %s20, 1
      %p38 = por %p36, %p37
      %p39 = scmp.ne.s32.totalorder %s28, %s29
      %p40 = scmp.eq.s32.totalorder %s20, 0
      %p41 = por %p39, %p40
      %p42 = scmp.ne.s32.totalorder %s28, %s29
      %p43 = scmp.eq.s32.totalorder %s21, 1
      %p44 = por %p42, %p43
      %p46 = scmp.ne.s32.totalorder %s29, %s45
      %p47 = scmp.eq.s32.totalorder %s21, 0
      %p48 = por %p46, %p47
      %s50 = sadd.s32 %s49, 1
      %p53 = scmp.eq.s32.totalorder %s15, 1
      %p54 = scmp.ne.s32.totalorder %s49, %s51
      %p55 = scmp.eq.s32.totalorder %s15, 0
      %p56 = por %p54, %p55
      %p57 = scmp.ne.s32.totalorder %s49, %s51
      %p58 = scmp.eq.s32.totalorder %s20, 1
      %p59 = por %p57, %p58
      %p60 = scmp.ne.s32.totalorder %s51, %s52
      %p61 = scmp.eq.s32.totalorder %s20, 0
      %p62 = por %p60, %p61
      %p63 = scmp.ne.s32.totalorder %s51, %s52
      %p64 = scmp.eq.s32.totalorder %s21, 1
      %p65 = por %p63, %p64
      %p67 = scmp.ne.s32.totalorder %s52, %s66
      %p68 = scmp.eq.s32.totalorder %s21, 0
      %p69 = por %p67, %p68
      %s70 = ssub.s32 %s15, %s22
      %p71 = scmp.eq.s32.totalorder %s70, 0
      %s73 = sadd.s32 %s72, 1
      %s74 = scalar_select %p71, %s72, %s73
      %p77 = pneg %p71
      %p78 = scmp.eq.s32.totalorder %s15, 1
      %p79 = por %p77, %p78
      %p80 = scmp.ne.s32.totalorder %s72, %s75
      %p81 = scmp.eq.s32.totalorder %s15, 0
      %p82 = por %p80, %p81
      %p83 = scmp.ne.s32.totalorder %s72, %s75
      %p84 = scmp.eq.s32.totalorder %s20, 1
      %p85 = por %p83, %p84
      %p86 = scmp.ne.s32.totalorder %s75, %s76
      %p87 = scmp.eq.s32.totalorder %s20, 0
      %p88 = por %p86, %p87
      %p89 = scmp.ne.s32.totalorder %s75, %s76
      %p90 = scmp.eq.s32.totalorder %s21, 1
      %p91 = por %p89, %p90
      %p93 = scmp.ne.s32.totalorder %s76, %s92
      %p94 = scmp.eq.s32.totalorder %s21, 0
      %p95 = por %p93, %p94
      %p96 = scmp.le.s32.totalorder 1, %s15
      %p97 = scmp.lt.s32.totalorder %s15, 3
      %p98 = pnand %p96, %p97
      %p99 = pneg %p98
      // Predicated region
      $region9: #{tpu_custom_call.1} parent=5 // pred_check
        _
      $region10: #{tpu_custom_call.1} parent=5 // pred_check_branch
        %101 = sbr.rel (%p98) target = $region12
      $region11: #{tpu_custom_call.1} parent=5 // pred_region
        %s102 = ssub.s32 %s15, 1
        // Predicated region
        $region13: #{tpu_custom_call.1} parent=11 // pred_check
          %p103 = pneg %p62
        $region14: #{tpu_custom_call.1} parent=11 // pred_check_branch
          %105 = sbr.rel (%p103) target = $region16
        $region15: #{tpu_custom_call.1} parent=11 // pred_region
          %s107 = ssub.s32 512, 512
          %108 = vsyncadd [#allocation6], %s107
          %s109 = sshll.u32 [#allocation5], 4
          %s110 = int_to_ptr.vmem [resolvable:$true] %s109
          %115 = dma.hbm_to_vmem [thread:$0]  %s1, 512, %s110, [#allocation6], 128, 128, 8
        $region16: #{tpu_custom_call.1} parent=11 // pred_fallthru
          _
      $region12: #{tpu_custom_call.1} parent=5 // pred_fallthru
        _
      %p116 = scmp.lt.s32.totalorder %s15, 2
      // Predicated region
      $region17: #{tpu_custom_call.1} parent=5 // pred_check
        %p117 = pneg %p116
      $region18: #{tpu_custom_call.1} parent=5 // pred_check_branch
        %119 = sbr.rel (%p117) target = $region20
      $region19: #{tpu_custom_call.1} parent=5 // pred_region
        // Predicated region
        $region21: #{tpu_custom_call.1} parent=19 // pred_check
          %p120 = pneg %p35
        $region22: #{tpu_custom_call.1} parent=19 // pred_check_branch
          %122 = sbr.rel (%p120) target = $region24
        $region23: #{tpu_custom_call.1} parent=19 // pred_region
          %s123 = sand.u32 %s25, 1
          %s124 = scalar_lea.sflag [#allocation3], %s123
          %s125 = sand.u32 %s25, 1
          %s126 = smul.addr %s125, 8
          %s127 = scalar_lea.vmem [#allocation2], %s126
          %s129 = ssub.s32 128, 128
          %130 = vsyncadd %s124, %s129
          %s131 = smul.addr %s15, 128
          %s132 = scalar_lea.hbm %s0, %s131
          %s134 = sshll.u32 %s127, 4
          %s135 = int_to_ptr.vmem [resolvable:$true] %s134
          %137 = dma.hbm_to_vmem [thread:$0]  %s132, 128, %s135, %s124
        $region24: #{tpu_custom_call.1} parent=19 // pred_fallthru
          _
      $region20: #{tpu_custom_call.1} parent=5 // pred_fallthru
        _
      %p138 = scmp.le.s32.totalorder 1, %s15
      %p139 = scmp.lt.s32.totalorder %s15, 3
      %p140 = pnand %p138, %p139
      %p141 = pneg %p140
      // Predicated region
      $region25: #{tpu_custom_call.1} parent=5 // pred_check
        _
      $region26: #{tpu_custom_call.1} parent=5 // pred_check_branch
        %143 = sbr.rel (%p140) target = $region28
      $region27: #{tpu_custom_call.1} parent=5 // pred_region
        %s144 = ssub.s32 %s15, 1
        %s145 = sand.u32 %s28, 1
        %s146 = scalar_lea.sflag [#allocation3], %s145
        %s147 = sand.u32 %s28, 1
        %s148 = smul.addr %s147, 8
        %s149 = scalar_lea.vmem [#allocation2], %s148
        // Predicated region
        $region29: #{tpu_custom_call.1} parent=27 // pred_check
          %p150 = pneg %p41
        $region30: #{tpu_custom_call.1} parent=27 // pred_check_branch
          %152 = sbr.rel (%p150) target = $region32
        $region31: #{tpu_custom_call.1} parent=27 // pred_region
          %153 = dma.done %s146, 128
        $region32: #{tpu_custom_call.1} parent=27 // pred_fallthru
          _
        // Predicated region
        $region33: #{tpu_custom_call.1} parent=27 // pred_check
          %p154 = pneg %p62
        $region34: #{tpu_custom_call.1} parent=27 // pred_check_branch
          %156 = sbr.rel (%p154) target = $region36
        $region35: #{tpu_custom_call.1} parent=27 // pred_region
          %157 = dma.done [#allocation6], 512
        $region36: #{tpu_custom_call.1} parent=27 // pred_fallthru
          _
        %s158 = sand.u32 %s28, 1
        %s159 = scalar_lea.sflag [#allocation3], %s158
        %s160 = sand.u32 %s28, 1
        %s161 = smul.addr %s160, 8
        %s162 = scalar_lea.vmem [#allocation2], %s161
        %p163 = pneg %p41
        %p164 = pneg %p38
        %p165 = pneg %p62
        %p166 = pneg %p59
        %p167 = pneg %p88
        %p168 = pneg %p85
        %s169 = sand.u32 %s75, 1
        %s170 = scalar_lea.sflag [#allocation4], %s169
        %s171 = sand.u32 %s75, 1
        %s172 = smul.addr %s171, 8
        %s173 = scalar_lea.vmem [#allocation7], %s172
        %v174 = vld [vmem:[%s149] sm:$0xff]
        %v175 = vld [vmem:[#allocation5] sm:$0xff]
        %v176 = vld [vmem:[#allocation5 + $0x8] sm:$0xff]
        %v177 = vld [vmem:[#allocation5 + $0x10] sm:$0xff]
        %v178 = vld [vmem:[#allocation5 + $0x18] sm:$0xff]
        %vm179 = vcmask 261120
        %v181 = vsel %vm179, %v174, 0
        %183 = vmatprep.subr.mxu0 0.0
        %184 = vmatpush1.msra.mxu0 %v175
        %185 = vmatprep.subr.mxu0 0.0
        %186 = vmatpush1.msra.mxu0 %v176
        %187 = vmatprep.subr.mxu0 0.0
        %188 = vmatpush1.msra.mxu0 %v177
        %189 = vmatprep.subr.mxu0 0.0
        %190 = vmatpush1.msra.mxu0 %v178
        %191 = vmatprep.subr.mxu0 0.0
        %192 = vmatpush1.msra.mxu0 0.0
        %193 = vmatprep.subr.mxu0 0.0
        %194 = vmatpush1.msra.mxu0 0.0
        %195 = vmatprep.subr.mxu0 0.0
        %196 = vmatpush1.msra.mxu0 0.0
        %197 = vmatprep.subr.mxu0 0.0
        %198 = vmatpush1.msra.mxu0 0.0
        %199 = vmatprep.subr.mxu0 0.0
        %200 = vmatpush1.msra.mxu0 0.0
        %201 = vmatprep.subr.mxu0 0.0
        %202 = vmatpush1.msra.mxu0 0.0
        %203 = vmatprep.subr.mxu0 0.0
        %204 = vmatpush1.msra.mxu0 0.0
        %205 = vmatprep.subr.mxu0 0.0
        %206 = vmatpush1.msra.mxu0 0.0
        %207 = vmatprep.subr.mxu0 0.0
        %208 = vmatpush1.msra.mxu0 0.0
        %209 = vmatprep.subr.mxu0 0.0
        %210 = vmatpush1.msra.mxu0 0.0
        %211 = vmatprep.subr.mxu0 0.0
        %212 = vmatpush1.msra.mxu0 0.0
        %213 = vmatprep.subr.mxu0 0.0
        %214 = vmatpush1.msra.mxu0 0.0
        %215 = vmatprep.subr.mxu0 0.0
        %216 = vmatpush1.msra.mxu0 0.0
        %217 = vmatprep.subr.mxu0 0.0
        %218 = vmatpush1.msra.mxu0 0.0
        %219 = vmatprep.subr.mxu0 0.0
        %220 = vmatpush1.msra.mxu0 0.0
        %221 = vmatprep.subr.mxu0 0.0
        %222 = vmatpush1.msra.mxu0 0.0
        %223 = vmatprep.subr.mxu0 0.0
        %224 = vmatpush1.msra.mxu0 0.0
        %225 = vmatprep.subr.mxu0 0.0
        %226 = vmatpush1.msra.mxu0 0.0
        %227 = vmatprep.subr.mxu0 0.0
        %228 = vmatpush1.msra.mxu0 0.0
        %229 = vmatprep.subr.mxu0 0.0
        %230 = vmatpush1.msra.mxu0 0.0
        %231 = vmatprep.subr.mxu0 0.0
        %232 = vmatpush1.msra.mxu0 0.0
        %233 = vmatprep.subr.mxu0 0.0
        %234 = vmatpush1.msra.mxu0 0.0
        %235 = vmatprep.subr.mxu0 0.0
        %236 = vmatpush1.msra.mxu0 0.0
        %237 = vmatprep.subr.mxu0 0.0
        %238 = vmatpush1.msra.mxu0 0.0
        %239 = vmatprep.subr.mxu0 0.0
        %240 = vmatpush1.msra.mxu0 0.0
        %241 = vmatprep.subr.mxu0 0.0
        %242 = vmatpush1.msra.mxu0 0.0
        %243 = vmatprep.subr.mxu0 0.0
        %244 = vmatpush1.msra.mxu0 0.0
        %245 = vmatprep.subr.mxu0 0.0
        %246 = vmatpush1.msra.mxu0 0.0
        %247 = vmatprep.mubr.f32.mxu0 0.0
        %248 = vmatmul.mubr.f32.gmra.mrb[0].mxu0 %v181
        %v249 = vpop.f32.mrb[0].mxu0
        %v250 = vadd.f32 0.0, %v249
        %v251 = vpop.f32.mrb[0].mxu0
        %252 = vdwg.mxu0
        %253 = vst [vmem:[%s173] sm:$0xff] %v250
        %s254 = sand.u32 %s75, 1
        %s255 = scalar_lea.sflag [#allocation4], %s254
        %s256 = sand.u32 %s75, 1
        %s257 = smul.addr %s256, 8
        %s258 = scalar_lea.vmem [#allocation7], %s257
        // Predicated region
        $region37: #{tpu_custom_call.1} parent=27 // pred_check
          %p259 = pneg %p85
        $region38: #{tpu_custom_call.1} parent=27 // pred_check_branch
          %261 = sbr.rel (%p259) target = $region40
        $region39: #{tpu_custom_call.1} parent=27 // pred_region
          %s263 = ssub.s32 128, 128
          %264 = vsyncadd %s255, %s263
          %s265 = smul.addr %s20, 128
          %s266 = scalar_lea.hbm %s2, %s265
          %s268 = sshll.u32 %s258, 4
          %s269 = int_to_ptr.vmem [resolvable:$true] %s268
          %271 = dma.vmem_to_hbm [thread:$0]  %s269, 128, %s266, %s255
        $region40: #{tpu_custom_call.1} parent=27 // pred_fallthru
          _
      $region28: #{tpu_custom_call.1} parent=5 // pred_fallthru
        _
      %p272 = scmp.le.s32.totalorder 2, %s15
      // Predicated region
      $region41: #{tpu_custom_call.1} parent=5 // pred_check
        %p273 = pneg %p272
      $region42: #{tpu_custom_call.1} parent=5 // pred_check_branch
        %275 = sbr.rel (%p273) target = $region44
      $region43: #{tpu_custom_call.1} parent=5 // pred_region
        %s276 = ssub.s32 %s15, 2
        // Predicated region
        $region45: #{tpu_custom_call.1} parent=43 // pred_check
          %p277 = pneg %p91
        $region46: #{tpu_custom_call.1} parent=43 // pred_check_branch
          %279 = sbr.rel (%p277) target = $region48
        $region47: #{tpu_custom_call.1} parent=43 // pred_region
          %s280 = sand.u32 %s76, 1
          %s281 = scalar_lea.sflag [#allocation4], %s280
          %s282 = sand.u32 %s76, 1
          %s283 = smul.addr %s282, 8
          %s284 = scalar_lea.vmem [#allocation7], %s283
          %285 = dma.done %s281, 128
        $region48: #{tpu_custom_call.1} parent=43 // pred_fallthru
          _
      $region44: #{tpu_custom_call.1} parent=5 // pred_fallthru
        _
    $region6: #{tpu_custom_call.1} parent=1 // loop_footer
      %s19 = sadd.s32 1, %s15
    $region7: #{tpu_custom_call.1} parent=1 // loop_footer_branch
      %14 = sbr.rel target = $region3
    $region8: #{tpu_custom_call.1} parent=1 // loop_exit
      _
    %286 = vsyncpa [#allocation3], 1
    %s287 = scalar_lea.sflag [#allocation3], 1
    %288 = vsyncpa %s287, 1
    %289 = vsyncpa [#allocation6], 1
    %290 = vsyncpa [#allocation4], 1
    %s291 = scalar_lea.sflag [#allocation4], 1
    %292 = vsyncpa %s291, 1

</llo_original>
